<compile_context>
chip_gen: v7x
topology: tpu7x:2x2x1
jax: 0.10.0
libtpu: 0.0.40
codegen_flags: <defaults>
</compile_context>

<pallas_src>
import jax
import jax.numpy as jnp
from jax.experimental import pallas as pl
from jax.experimental.pallas import tpu as pltpu


# Skip the device pass entirely below this size (a couple of grid steps).
_SMALL_BYTES_THRESHOLD = 4 * 1024 * 1024


def _identity_kernel(x_ref, o_ref):
    # Pure data movement: load the VMEM tile, store it back out.
    o_ref[...] = x_ref[...]


def _tpu_generation():
    """Best-effort TPU generation from the device kind string (None if unknown)."""
    try:
        kind = jax.devices()[0].device_kind.lower()
    except Exception:  # pragma: no cover - defensive
        return None
    if "v7" in kind:
        return 7
    if "v6" in kind:
        return 6
    if "v5" in kind:
        return 5
    return None


def _tile_bytes_and_vmem_limit(gen):
    """Per-generation (target tile bytes, vmem_limit_bytes)."""
    if gen == 7:
        # 3.2 TB/s per TC: 8 MiB tiles ~93%+ of roofline.
        # 2(in) + 2(out) double buffers x 8 MiB = 32 MiB + scratch headroom.
        return 8 * 1024 * 1024, 48 * 1024 * 1024
    if gen == 6:
        # ~1.4 TB/s: 4 MiB tiles ~94% of roofline; 16 MiB of buffers.
        return 4 * 1024 * 1024, 32 * 1024 * 1024
    # v5e (~0.8 TB/s) or unknown: 2 MiB is already ~93% of roofline.
    return 2 * 1024 * 1024, 32 * 1024 * 1024


def _min_sublanes(dtype):
    """Minimum second-minor tile size for full vregs at this dtype."""
    bits = jnp.dtype(dtype).itemsize * 8
    if bits >= 32:
        return 8
    if bits == 16:
        return 16
    return 32  # int8 / fp8


def _pick_lanes(total, sub):
    """Widest multiple-of-128 lane count whose row count is a multiple of `sub`.

    Falls back to the widest plain divisor (previous behavior) if no lane
    count gives full-sublane rows; returns None if 128 doesn't divide total.
    """
    candidates = (4096, 2048, 1024, 512, 256, 128)
    fallback = None
    for lanes in candidates:
        if total % lanes != 0:
            continue
        rows = total // lanes
        if rows >= sub and rows % sub == 0:
            return lanes
        if fallback is None:
            fallback = lanes
    return fallback


def _pallas_identity(x, force=False):
    """Identity pass over x through a tiled, pipelined Pallas copy kernel."""
    total = x.size
    nbytes = total * jnp.dtype(x.dtype).itemsize

    if total == 0:
        return x
    if not force and nbytes < _SMALL_BYTES_THRESHOLD:
        # Small arrays: the kernel is pure dispatch + per-step overhead with
        # zero benefit over the metadata reshape.
        return x

    sub = _min_sublanes(x.dtype)
    lanes = _pick_lanes(total, sub)
    if lanes is None:
        # Not a multiple of 128 elements: the op needs no data movement, so
        # just hand the array back (the caller's reshape is metadata-only).
        return x

    rows = total // lanes
    itemsize = jnp.dtype(x.dtype).itemsize

    gen = _tpu_generation()
    target_tile_bytes, vmem_limit = _tile_bytes_and_vmem_limit(gen)

    # Largest multiple-of-`sub` row count near the target tile size.
    tile_rows = max(sub, (target_tile_bytes // (lanes * itemsize)) // sub * sub)
    if tile_rows >= rows:
        tile_rows = rows  # full-extent block is always a legal block shape

    x2d = x.reshape(rows, lanes)
    grid_steps = pl.cdiv(rows, tile_rows)  # partial trailing block handled by Pallas

    # Only CORE_PARALLEL reliably shards across v7x's 2 TensorCores; it needs
    # at least 2 grid steps to have anything to split.
    if gen == 7 and grid_steps >= 2:
        dim_semantics = (pltpu.CORE_PARALLEL,)
    else:
        dim_semantics = ("parallel",)

    out2d = pl.pallas_call(
        _identity_kernel,
        out_shape=jax.ShapeDtypeStruct((rows, lanes), x.dtype),
        grid=(grid_steps,),
        in_specs=[pl.BlockSpec((tile_rows, lanes), lambda i: (i, 0))],
        out_specs=pl.BlockSpec((tile_rows, lanes), lambda i: (i, 0)),
        compiler_params=pltpu.CompilerParams(
            dimension_semantics=dim_semantics,
            vmem_limit_bytes=vmem_limit,
        ),
        cost_estimate=pl.CostEstimate(
            flops=0, transcendentals=0, bytes_accessed=2 * nbytes
        ),
    )(x2d)
    return out2d.reshape(x.shape)


def increase_dim(x, dim=1, use_pallas_copy=False, force_kernel=False):
    """JAX equivalent of batchflow IncreaseDim(dim).forward(x).

    Default path is a pure metadata reshape (the op moves no data).  Set
    `use_pallas_copy=True` to route the bytes through the Pallas identity
    kernel (large lane-dense tiles, generation-aware); small arrays still
    skip the kernel unless `force_kernel=True`.
    """
    shape = x.shape
    n_ones = len(shape) - 2 + dim            # exactly as the PyTorch forward computes it
    out_shape = tuple(shape) + (1,) * n_ones
    y = _pallas_identity(x, force=force_kernel) if use_pallas_copy else x
    return jnp.reshape(y, out_shape)          # view == metadata-only reshape


if __name__ == "__main__":
    key = jax.random.PRNGKey(0)
    # NCHW input: batch=2, channels=4, spatial=16x16
    x = jax.random.normal(key, (2, 4, 16, 16), dtype=jnp.float32)

    # Run the Pallas kernel path once (force past the small-array early exit).
    out = increase_dim(x, dim=1, use_pallas_copy=True, force_kernel=True)
    out = jax.block_until_ready(out)

    # Expected shape: (2, 4, 16, 16) + (1,)*(4 - 2 + 1) = (2, 4, 16, 16, 1, 1, 1)
    expected_shape = (2, 4, 16, 16, 1, 1, 1)
    assert out.shape == expected_shape, (out.shape, expected_shape)
    assert out.dtype == x.dtype
    assert bool(jnp.array_equal(out.reshape(x.shape), x))

    # Recommended (free) path: pure metadata reshape, zero HBM traffic.
    out_free = jax.block_until_ready(increase_dim(x, dim=1))
    assert out_free.shape == expected_shape
    assert bool(jnp.array_equal(out_free.reshape(x.shape), x))

    print("KERNEL_OK")
</pallas_src>

<mosaic_0001>
module attributes {stable_mosaic.version = 11 : i64} {
  func.func @_identity_kernel(%arg0: i32, %arg1: memref<8x256xf32, #tpu.memory_space<vmem>>, %arg2: memref<8x256xf32, #tpu.memory_space<vmem>>) attributes {dimension_semantics = [#tpu.dimension_semantics<parallel>], iteration_bounds = array<i64: 1>, scalar_prefetch = 0 : i64, scratch_operands = 0 : i64, tpu.core_type = #tpu.core_type<tc>, window_params = [{transform_indices = @transform_0, window_bounds = array<i64: 8, 256>}, {transform_indices = @transform_1, window_bounds = array<i64: 8, 256>}]} {
    %c0 = arith.constant 0 : index
    %c0_0 = arith.constant 0 : index
    %0 = vector.load %arg1[%c0, %c0_0] : memref<8x256xf32, #tpu.memory_space<vmem>>, vector<8x256xf32>
    %c0_1 = arith.constant 0 : index
    %c0_2 = arith.constant 0 : index
    %1 = vector.load %arg2[%c0_1, %c0_2] : memref<8x256xf32, #tpu.memory_space<vmem>>, vector<8x256xf32>
    tpu.vector_store %arg2[%c0_1, %c0_2], %0 {strides = array<i32>} : memref<8x256xf32, #tpu.memory_space<vmem>>, vector<8x256xf32>,
    return
  }
  func.func @transform_0(%arg0: i32) -> (i32, i32) {
    %c0_i32 = arith.constant 0 : i32
    %c0_i32_0 = arith.constant 0 : i32
    return %arg0, %c0_i32 : i32, i32
  }
  func.func @transform_1(%arg0: i32) -> (i32, i32) {
    %c0_i32 = arith.constant 0 : i32
    %c0_i32_0 = arith.constant 0 : i32
    return %arg0, %c0_i32 : i32, i32
  }
}

</mosaic_0001>

<llo_original>
// kernel: tpu_custom_call.1
$region0: #{tpu_custom_call.1}
  #allocation0 [shape = 'u32[]', space=smem, size = 0x4, offset = 0x4, fixed_abs, tag = 'smem constant byte address 0x4 - core index']
  #allocation1 [shape = 'u32[144,128]{1,0:T(1,128)}', space=vmem, size = 0x12000, scoped, tag = 'internal scratch']
  %s0 = inlined_call_operand.hbm [shape: f32[8,256], index: 0, kind: input, shape index: {}]
  %s1 = inlined_call_operand.hbm [shape: f32[8,256], index: 1, kind: output, shape index: {}]
  %s2 = sld [smem:[#allocation0]]
  $region18: #{tpu_custom_call.1} parent=0
    _
  %s4 = ssub.s32 1, %s2
  %s5 = scalar_select 0, %s4, %s2
  $region1: #{tpu_custom_call.1} parent=0
    #allocation2 [shape = 'u8[8192]{0}', space=vmem, size = 0x2000, scoped, tag = 'input window, operand 0, single buffered']
    #allocation3 [shape = 's32[1]{0}', space=sflag, size = 0x4, scoped, tag = 'scoped memory for tpu_custom_call.1']
    #allocation4 [shape = 's32[1]{0}', space=sflag, size = 0x4, scoped, tag = 'scoped memory for tpu_custom_call.1']
    #allocation5 [shape = 'u8[8192]{0}', space=vmem, size = 0x2000, scoped, tag = 'output window, operand 0, single buffered']
    %6 = vsyncpa [#allocation3], 0
    %7 = vsyncpa [#allocation4], 0
    // Predicated region
    $region2: #{tpu_custom_call.1} parent=1 // pred_check
      _
    $region3: #{tpu_custom_call.1} parent=1 // pred_check_branch
      %9 = sbr.rel (0) target = $region5
    $region4: #{tpu_custom_call.1} parent=1 // pred_region
      %s11 = ssub.s32 256, 256
      %12 = vsyncadd [#allocation3], %s11
      %s14 = sshll.u32 [#allocation2], 4
      %s15 = int_to_ptr.vmem [resolvable:$true] %s14
      %17 = dma.hbm_to_vmem [thread:$0]  %s0, 256, %s15, [#allocation3]
    $region5: #{tpu_custom_call.1} parent=1 // pred_fallthru
      _
    // Predicated region
    $region6: #{tpu_custom_call.1} parent=1 // pred_check
      _
    $region7: #{tpu_custom_call.1} parent=1 // pred_check_branch
      %19 = sbr.rel (0) target = $region9
    $region8: #{tpu_custom_call.1} parent=1 // pred_region
      %20 = dma.done [#allocation3], 256
    $region9: #{tpu_custom_call.1} parent=1 // pred_fallthru
      _
    %v21 = vld [vmem:[#allocation2] sm:$0xff]
    %v22 = vld [vmem:[#allocation2 + $0x8] sm:$0xff]
    %23 = vst [vmem:[#allocation5] sm:$0xff] %v21
    %24 = vst [vmem:[#allocation5 + $0x8] sm:$0xff] %v22
    // Predicated region
    $region10: #{tpu_custom_call.1} parent=1 // pred_check
      _
    $region11: #{tpu_custom_call.1} parent=1 // pred_check_branch
      %26 = sbr.rel (0) target = $region13
    $region12: #{tpu_custom_call.1} parent=1 // pred_region
      %s28 = ssub.s32 256, 256
      %29 = vsyncadd [#allocation4], %s28
      %s31 = sshll.u32 [#allocation5], 4
      %s32 = int_to_ptr.vmem [resolvable:$true] %s31
      %34 = dma.vmem_to_hbm [thread:$0]  %s32, 256, %s1, [#allocation4]
    $region13: #{tpu_custom_call.1} parent=1 // pred_fallthru
      _
    // Predicated region
    $region14: #{tpu_custom_call.1} parent=1 // pred_check
      _
    $region15: #{tpu_custom_call.1} parent=1 // pred_check_branch
      %36 = sbr.rel (0) target = $region17
    $region16: #{tpu_custom_call.1} parent=1 // pred_region
      %37 = dma.done [#allocation4], 256
    $region17: #{tpu_custom_call.1} parent=1 // pred_fallthru
      _
    %38 = vsyncpa [#allocation3], 1
    %39 = vsyncpa [#allocation4], 1

</llo_original>
